<compile_context>
chip_gen: v6e
topology: v6e:2x2x1
jax: 0.10.0
libtpu: 0.0.40
codegen_flags: <defaults>
</compile_context>

<pallas_src>
import functools

import jax
import jax.numpy as jnp
from jax.experimental import pallas as pl
from jax.experimental.pallas import tpu as pltpu


def _leaky_relu(v, slope=0.2):
    # slope < 1  =>  leaky_relu(v) == max(v, slope*v); 2 VALU ops vs cmp+mul+sel.
    return jnp.maximum(v, slope * v)


def _vae_kernel(dims,
                x_ref, eps_ref,
                ew1_ref, eb1_ref, ew2_ref, eb2_ref, ewmv_ref, ebmv_ref,
                dw1_ref, db1_ref, dw2_ref, db2_ref, dwo_ref, dbo_ref,
                out_ref):
    In, H, L, O, W = dims
    f32 = jnp.float32

    x = x_ref[...].astype(f32)        # (TB, In)
    eps = eps_ref[...].astype(f32)    # (TB, L)

    # ---- Encoder ----
    h = _leaky_relu(jnp.dot(x, ew1_ref[...].astype(f32),
                            preferred_element_type=f32) + eb1_ref[...].astype(f32))
    h = _leaky_relu(jnp.dot(h, ew2_ref[...].astype(f32),
                            preferred_element_type=f32) + eb2_ref[...].astype(f32))
    # Fused mean/var head: one MXU push instead of two tiny dependent ones.
    mv = jnp.dot(h, ewmv_ref[...].astype(f32),
                 preferred_element_type=f32) + ebmv_ref[...].astype(f32)   # (TB, 2L)
    mean = mv[:, 0:L]
    log_var = mv[:, L:2 * L]

    # ---- Reparameterization: z = mean + exp(0.5*log_var) * eps ----
    z = mean + jnp.exp(0.5 * log_var) * eps

    # ---- Decoder ----
    d = _leaky_relu(jnp.dot(z, dw1_ref[...].astype(f32),
                            preferred_element_type=f32) + db1_ref[...].astype(f32))
    d = _leaky_relu(jnp.dot(d, dw2_ref[...].astype(f32),
                            preferred_element_type=f32) + db2_ref[...].astype(f32))
    logits = jnp.dot(d, dwo_ref[...].astype(f32),
                     preferred_element_type=f32) + dbo_ref[...].astype(f32)
    # sigmoid: exp on the EUP; approx reciprocal also on the EUP slot
    # (keeps the divide off the VALU; ~1e-3-level relative error).
    x_hat = pl.reciprocal(1.0 + jnp.exp(-logits), approx=True)

    # ---- Single lane-dense (TB, W) store: [x_hat | mean|log_var | zero-pad] ----
    tb = x.shape[0]
    pad = W - O - 2 * L
    if pad > 0:
        packed = jnp.concatenate(
            [x_hat, mv, jnp.zeros((tb, pad), f32)], axis=1)
    else:
        packed = jnp.concatenate([x_hat, mv], axis=1)
    out_ref[...] = packed.astype(out_ref.dtype)


def _pick_batch_tile(B, row_bytes):
    # Keep double-buffered per-step I/O (x, eps, packed output) well under the
    # default scoped-VMEM limit on every generation (v7x: 64 MiB physical).
    cap = max(8, (8 << 20) // max(2 * row_bytes, 1))
    # Prefer tiles that (a) amortize the ~600-cycle per-grid-step overhead and
    # (b) leave >= 2 grid steps so v7x's second TensorCore gets work on the
    # "parallel" batch axis.
    for tb in (4096, 2048, 1024, 512, 256, 128, 64, 32, 16, 8):
        if tb <= cap and B % tb == 0 and B // tb >= 2:
            return tb
    # Tiny / ragged batch: single grid step with the full batch.
    # TODO(synk): masked last block for huge ragged batches that exceed `cap`.
    return B


def vae_forward(x, params, eps):
    """x: (B, In); eps: (B, L); params: dict from init_params().

    Returns (x_hat, mean, log_var) with x_hat in x.dtype and mean/log_var f32.
    """
    B, In = x.shape
    L = eps.shape[1]
    H = params["ew1"].shape[1]
    O = params["dwo"].shape[1]
    # Lane-dense packed output width: [x_hat | mean | log_var] rounded to 128.
    W = ((O + 2 * L + 127) // 128) * 128

    out_dtype = x.dtype
    row_bytes = (In * x.dtype.itemsize
                 + L * eps.dtype.itemsize
                 + W * jnp.dtype(out_dtype).itemsize)
    TB = _pick_batch_tile(B, row_bytes)
    grid = (B // TB,)

    # Fused mean/var head weights: one (H, 2L) matmul.
    ewmv = jnp.concatenate([params["ewm"], params["ewv"]], axis=1)
    ebmv = jnp.concatenate([params["ebm"], params["ebv"]], axis=1)

    kernel = functools.partial(_vae_kernel, (In, H, L, O, W))

    def pinned(shape):
        # Weights/biases: whole-array block, constant index_map -> DMA'd once,
        # VMEM-resident across all grid steps.
        return pl.BlockSpec(shape, lambda i: (0,) * len(shape))

    out = pl.pallas_call(
        kernel,
        out_shape=jax.ShapeDtypeStruct((B, W), out_dtype),
        grid=grid,
        in_specs=[
            pl.BlockSpec((TB, In), lambda i: (i, 0)),     # x   (batch-tiled)
            pl.BlockSpec((TB, L), lambda i: (i, 0)),      # eps (batch-tiled)
            pinned(params["ew1"].shape), pinned(params["eb1"].shape),
            pinned(params["ew2"].shape), pinned(params["eb2"].shape),
            pinned(ewmv.shape), pinned(ebmv.shape),
            pinned(params["dw1"].shape), pinned(params["db1"].shape),
            pinned(params["dw2"].shape), pinned(params["db2"].shape),
            pinned(params["dwo"].shape), pinned(params["dbo"].shape),
        ],
        out_specs=pl.BlockSpec((TB, W), lambda i: (i, 0)),
        compiler_params=pltpu.CompilerParams(
            dimension_semantics=("parallel",)),
    )(x, eps,
      params["ew1"], params["eb1"], params["ew2"], params["eb2"], ewmv, ebmv,
      params["dw1"], params["db1"], params["dw2"], params["db2"],
      params["dwo"], params["dbo"])

    x_hat = out[:, :O]
    mv = out[:, O:O + 2 * L].astype(jnp.float32)
    mean = mv[:, :L]
    log_var = mv[:, L:]
    return x_hat, mean, log_var


def init_params(key, input_dim, hidden_dim, latent_dim, output_dim):
    """PyTorch-Linear-like init (uniform +/- 1/sqrt(fan_in)).

    Weights stored pre-transposed as (in_features, out_features); biases as
    (1, out_features)."""
    def linear(k, fan_in, fan_out):
        kw, kb = jax.random.split(k)
        bound = 1.0 / jnp.sqrt(fan_in)
        w = jax.random.uniform(kw, (fan_in, fan_out), jnp.float32, -bound, bound)
        b = jax.random.uniform(kb, (1, fan_out), jnp.float32, -bound, bound)
        return w, b

    keys = jax.random.split(key, 7)
    ew1, eb1 = linear(keys[0], input_dim, hidden_dim)     # Encoder.FC_input
    ew2, eb2 = linear(keys[1], hidden_dim, hidden_dim)    # Encoder.FC_input2
    ewm, ebm = linear(keys[2], hidden_dim, latent_dim)    # Encoder.FC_mean
    ewv, ebv = linear(keys[3], hidden_dim, latent_dim)    # Encoder.FC_var
    dw1, db1 = linear(keys[4], latent_dim, hidden_dim)    # Decoder.FC_hidden
    dw2, db2 = linear(keys[5], hidden_dim, hidden_dim)    # Decoder.FC_hidden2
    dwo, dbo = linear(keys[6], hidden_dim, output_dim)    # Decoder.FC_output
    return dict(
        ew1=ew1, eb1=eb1, ew2=ew2, eb2=eb2,
        ewm=ewm, ebm=ebm, ewv=ewv, ebv=ebv,
        dw1=dw1, db1=db1, dw2=dw2, db2=db2,
        dwo=dwo, dbo=dbo,
    )


if __name__ == "__main__":
    # Small shapes consistent with the module's forward (flat MLP VAE).
    batch = 8
    input_dim = 64
    hidden_dim = 32
    latent_dim = 16
    output_dim = input_dim  # VAE reconstructs its input

    root = jax.random.PRNGKey(0)
    k_params, k_x, k_eps = jax.random.split(root, 3)

    layers = init_params(k_params, input_dim, hidden_dim, latent_dim, output_dim)

    x = jax.random.normal(k_x, (batch, input_dim), jnp.float32)
    # epsilon of torch.randn_like(var): drawn deterministically here and
    # passed in explicitly (could instead use pltpu.prng_random_bits in-kernel).
    eps = jax.random.normal(k_eps, (batch, latent_dim), jnp.float32)

    x_hat, mean, log_var = vae_forward(x, layers, eps)
    jax.block_until_ready((x_hat, mean, log_var))

    # Pure-JAX reference for sanity check.
    def ref(x, p, eps):
        lr = lambda v: jnp.where(v > 0, v, 0.2 * v)
        h = lr(x @ p["ew1"] + p["eb1"])
        h = lr(h @ p["ew2"] + p["eb2"])
        mean = h @ p["ewm"] + p["ebm"]
        log_var = h @ p["ewv"] + p["ebv"]
        z = mean + jnp.exp(0.5 * log_var) * eps
        d = lr(z @ p["dw1"] + p["db1"])
        d = lr(d @ p["dw2"] + p["db2"])
        return jax.nn.sigmoid(d @ p["dwo"] + p["dbo"]), mean, log_var

    r_xhat, r_mean, r_logvar = ref(x, layers, eps)
    # x_hat tolerance relaxed: approx EUP reciprocal in the sigmoid.
    assert jnp.allclose(x_hat, r_xhat, atol=2e-3, rtol=2e-3)
    assert jnp.allclose(mean, r_mean, atol=1e-5, rtol=1e-5)
    assert jnp.allclose(log_var, r_logvar, atol=1e-5, rtol=1e-5)

    print("KERNEL_OK")
</pallas_src>

<mosaic_0001>
module attributes {stable_mosaic.version = 11 : i64} {
  func.func @_vae_kernel(%arg0: i32, %arg1: memref<8x64xf32, #tpu.memory_space<vmem>>, %arg2: memref<8x16xf32, #tpu.memory_space<vmem>>, %arg3: memref<64x32xf32, #tpu.memory_space<vmem>>, %arg4: memref<1x32xf32, #tpu.memory_space<vmem>>, %arg5: memref<32x32xf32, #tpu.memory_space<vmem>>, %arg6: memref<1x32xf32, #tpu.memory_space<vmem>>, %arg7: memref<32x32xf32, #tpu.memory_space<vmem>>, %arg8: memref<1x32xf32, #tpu.memory_space<vmem>>, %arg9: memref<16x32xf32, #tpu.memory_space<vmem>>, %arg10: memref<1x32xf32, #tpu.memory_space<vmem>>, %arg11: memref<32x32xf32, #tpu.memory_space<vmem>>, %arg12: memref<1x32xf32, #tpu.memory_space<vmem>>, %arg13: memref<32x64xf32, #tpu.memory_space<vmem>>, %arg14: memref<1x64xf32, #tpu.memory_space<vmem>>, %arg15: memref<8x128xf32, #tpu.memory_space<vmem>>) attributes {dimension_semantics = [#tpu.dimension_semantics<parallel>], iteration_bounds = array<i64: 1>, scalar_prefetch = 0 : i64, scratch_operands = 0 : i64, tpu.core_type = #tpu.core_type<tc>, window_params = [{transform_indices = @transform_0, window_bounds = array<i64: 8, 64>}, {transform_indices = @transform_1, window_bounds = array<i64: 8, 16>}, {pipeline_mode = #tpu.pipeline_mode<synchronous>, transform_indices = @transform_2, window_bounds = array<i64: 64, 32>}, {pipeline_mode = #tpu.pipeline_mode<synchronous>, transform_indices = @transform_3, window_bounds = array<i64: 1, 32>}, {pipeline_mode = #tpu.pipeline_mode<synchronous>, transform_indices = @transform_4, window_bounds = array<i64: 32, 32>}, {pipeline_mode = #tpu.pipeline_mode<synchronous>, transform_indices = @transform_5, window_bounds = array<i64: 1, 32>}, {pipeline_mode = #tpu.pipeline_mode<synchronous>, transform_indices = @transform_6, window_bounds = array<i64: 32, 32>}, {pipeline_mode = #tpu.pipeline_mode<synchronous>, transform_indices = @transform_7, window_bounds = array<i64: 1, 32>}, {pipeline_mode = #tpu.pipeline_mode<synchronous>, transform_indices = @transform_8, window_bounds = array<i64: 16, 32>}, {pipeline_mode = #tpu.pipeline_mode<synchronous>, transform_indices = @transform_9, window_bounds = array<i64: 1, 32>}, {pipeline_mode = #tpu.pipeline_mode<synchronous>, transform_indices = @transform_10, window_bounds = array<i64: 32, 32>}, {pipeline_mode = #tpu.pipeline_mode<synchronous>, transform_indices = @transform_11, window_bounds = array<i64: 1, 32>}, {pipeline_mode = #tpu.pipeline_mode<synchronous>, transform_indices = @transform_12, window_bounds = array<i64: 32, 64>}, {pipeline_mode = #tpu.pipeline_mode<synchronous>, transform_indices = @transform_13, window_bounds = array<i64: 1, 64>}, {transform_indices = @transform_14, window_bounds = array<i64: 8, 128>}]} {
    %c0 = arith.constant 0 : index
    %c0_0 = arith.constant 0 : index
    %0 = vector.load %arg1[%c0, %c0_0] : memref<8x64xf32, #tpu.memory_space<vmem>>, vector<8x64xf32>
    %c0_1 = arith.constant 0 : index
    %c0_2 = arith.constant 0 : index
    %1 = vector.load %arg2[%c0_1, %c0_2] : memref<8x16xf32, #tpu.memory_space<vmem>>, vector<8x16xf32>
    %c0_3 = arith.constant 0 : index
    %c0_4 = arith.constant 0 : index
    %2 = vector.load %arg3[%c0_3, %c0_4] : memref<64x32xf32, #tpu.memory_space<vmem>>, vector<64x32xf32>
    %cst = arith.constant dense<0.000000e+00> : vector<8x32xf32>
    %3 = tpu.matmul %0, %2, %cst {dimension_numbers = #tpu.dot_dimension_numbers<[1], [0], [0], [1], [0, 0, 1, 1], [], []>} : vector<8x64xf32>, vector<64x32xf32>, vector<8x32xf32> -> vector<8x32xf32>
    %c0_5 = arith.constant 0 : index
    %c0_6 = arith.constant 0 : index
    %4 = vector.load %arg4[%c0_5, %c0_6] : memref<1x32xf32, #tpu.memory_space<vmem>>, vector<1x32xf32>
    %5 = vector.broadcast %4 : vector<1x32xf32> to vector<8x32xf32>
    %6 = arith.addf %3, %5 : vector<8x32xf32>
    %cst_7 = arith.constant 2.000000e-01 : f32
    %7 = vector.broadcast %cst_7 : f32 to vector<8x32xf32>
    %8 = arith.mulf %7, %6 : vector<8x32xf32>
    %9 = arith.maximumf %6, %8 : vector<8x32xf32>
    %c0_8 = arith.constant 0 : index
    %c0_9 = arith.constant 0 : index
    %10 = vector.load %arg5[%c0_8, %c0_9] : memref<32x32xf32, #tpu.memory_space<vmem>>, vector<32x32xf32>
    %cst_10 = arith.constant dense<0.000000e+00> : vector<8x32xf32>
    %11 = tpu.matmul %9, %10, %cst_10 {dimension_numbers = #tpu.dot_dimension_numbers<[1], [0], [0], [1], [0, 0, 1, 1], [], []>} : vector<8x32xf32>, vector<32x32xf32>, vector<8x32xf32> -> vector<8x32xf32>
    %c0_11 = arith.constant 0 : index
    %c0_12 = arith.constant 0 : index
    %12 = vector.load %arg6[%c0_11, %c0_12] : memref<1x32xf32, #tpu.memory_space<vmem>>, vector<1x32xf32>
    %13 = vector.broadcast %12 : vector<1x32xf32> to vector<8x32xf32>
    %14 = arith.addf %11, %13 : vector<8x32xf32>
    %cst_13 = arith.constant 2.000000e-01 : f32
    %15 = vector.broadcast %cst_13 : f32 to vector<8x32xf32>
    %16 = arith.mulf %15, %14 : vector<8x32xf32>
    %17 = arith.maximumf %14, %16 : vector<8x32xf32>
    %c0_14 = arith.constant 0 : index
    %c0_15 = arith.constant 0 : index
    %18 = vector.load %arg7[%c0_14, %c0_15] : memref<32x32xf32, #tpu.memory_space<vmem>>, vector<32x32xf32>
    %cst_16 = arith.constant dense<0.000000e+00> : vector<8x32xf32>
    %19 = tpu.matmul %17, %18, %cst_16 {dimension_numbers = #tpu.dot_dimension_numbers<[1], [0], [0], [1], [0, 0, 1, 1], [], []>} : vector<8x32xf32>, vector<32x32xf32>, vector<8x32xf32> -> vector<8x32xf32>
    %c0_17 = arith.constant 0 : index
    %c0_18 = arith.constant 0 : index
    %20 = vector.load %arg8[%c0_17, %c0_18] : memref<1x32xf32, #tpu.memory_space<vmem>>, vector<1x32xf32>
    %21 = vector.broadcast %20 : vector<1x32xf32> to vector<8x32xf32>
    %22 = arith.addf %19, %21 : vector<8x32xf32>
    %23 = vector.extract_strided_slice %22 {offsets = [0, 0], sizes = [8, 16], strides = [1, 1]} : vector<8x32xf32> to vector<8x16xf32>
    %24 = vector.extract_strided_slice %22 {offsets = [0, 16], sizes = [8, 16], strides = [1, 1]} : vector<8x32xf32> to vector<8x16xf32>
    %cst_19 = arith.constant 5.000000e-01 : f32
    %25 = vector.broadcast %cst_19 : f32 to vector<8x16xf32>
    %26 = arith.mulf %25, %24 : vector<8x16xf32>
    %27 = math.exp %26 : vector<8x16xf32>
    %28 = arith.mulf %27, %1 : vector<8x16xf32>
    %29 = arith.addf %23, %28 : vector<8x16xf32>
    %c0_20 = arith.constant 0 : index
    %c0_21 = arith.constant 0 : index
    %30 = vector.load %arg9[%c0_20, %c0_21] : memref<16x32xf32, #tpu.memory_space<vmem>>, vector<16x32xf32>
    %cst_22 = arith.constant dense<0.000000e+00> : vector<8x32xf32>
    %31 = tpu.matmul %29, %30, %cst_22 {dimension_numbers = #tpu.dot_dimension_numbers<[1], [0], [0], [1], [0, 0, 1, 1], [], []>} : vector<8x16xf32>, vector<16x32xf32>, vector<8x32xf32> -> vector<8x32xf32>
    %c0_23 = arith.constant 0 : index
    %c0_24 = arith.constant 0 : index
    %32 = vector.load %arg10[%c0_23, %c0_24] : memref<1x32xf32, #tpu.memory_space<vmem>>, vector<1x32xf32>
    %33 = vector.broadcast %32 : vector<1x32xf32> to vector<8x32xf32>
    %34 = arith.addf %31, %33 : vector<8x32xf32>
    %cst_25 = arith.constant 2.000000e-01 : f32
    %35 = vector.broadcast %cst_25 : f32 to vector<8x32xf32>
    %36 = arith.mulf %35, %34 : vector<8x32xf32>
    %37 = arith.maximumf %34, %36 : vector<8x32xf32>
    %c0_26 = arith.constant 0 : index
    %c0_27 = arith.constant 0 : index
    %38 = vector.load %arg11[%c0_26, %c0_27] : memref<32x32xf32, #tpu.memory_space<vmem>>, vector<32x32xf32>
    %cst_28 = arith.constant dense<0.000000e+00> : vector<8x32xf32>
    %39 = tpu.matmul %37, %38, %cst_28 {dimension_numbers = #tpu.dot_dimension_numbers<[1], [0], [0], [1], [0, 0, 1, 1], [], []>} : vector<8x32xf32>, vector<32x32xf32>, vector<8x32xf32> -> vector<8x32xf32>
    %c0_29 = arith.constant 0 : index
    %c0_30 = arith.constant 0 : index
    %40 = vector.load %arg12[%c0_29, %c0_30] : memref<1x32xf32, #tpu.memory_space<vmem>>, vector<1x32xf32>
    %41 = vector.broadcast %40 : vector<1x32xf32> to vector<8x32xf32>
    %42 = arith.addf %39, %41 : vector<8x32xf32>
    %cst_31 = arith.constant 2.000000e-01 : f32
    %43 = vector.broadcast %cst_31 : f32 to vector<8x32xf32>
    %44 = arith.mulf %43, %42 : vector<8x32xf32>
    %45 = arith.maximumf %42, %44 : vector<8x32xf32>
    %c0_32 = arith.constant 0 : index
    %c0_33 = arith.constant 0 : index
    %46 = vector.load %arg13[%c0_32, %c0_33] : memref<32x64xf32, #tpu.memory_space<vmem>>, vector<32x64xf32>
    %cst_34 = arith.constant dense<0.000000e+00> : vector<8x64xf32>
    %47 = tpu.matmul %45, %46, %cst_34 {dimension_numbers = #tpu.dot_dimension_numbers<[1], [0], [0], [1], [0, 0, 1, 1], [], []>} : vector<8x32xf32>, vector<32x64xf32>, vector<8x64xf32> -> vector<8x64xf32>
    %c0_35 = arith.constant 0 : index
    %c0_36 = arith.constant 0 : index
    %48 = vector.load %arg14[%c0_35, %c0_36] : memref<1x64xf32, #tpu.memory_space<vmem>>, vector<1x64xf32>
    %49 = vector.broadcast %48 : vector<1x64xf32> to vector<8x64xf32>
    %50 = arith.addf %47, %49 : vector<8x64xf32>
    %cst_37 = arith.constant 0.000000e+00 : f32
    %51 = vector.broadcast %cst_37 : f32 to vector<8x64xf32>
    %52 = arith.subf %51, %50 : vector<8x64xf32>
    %53 = math.exp %52 : vector<8x64xf32>
    %cst_38 = arith.constant 1.000000e+00 : f32
    %54 = vector.broadcast %cst_38 : f32 to vector<8x64xf32>
    %55 = arith.addf %54, %53 : vector<8x64xf32>
    %56 = tpu.reciprocal %55 {approx = true} : vector<8x64xf32> -> vector<8x64xf32>
    %cst_39 = arith.constant 0.000000e+00 : f32
    %57 = vector.broadcast %cst_39 : f32 to vector<8x32xf32>
    %58 = tpu.concatenate %56, %22, %57 in 1 : vector<8x64xf32>, vector<8x32xf32>, vector<8x32xf32> -> vector<8x128xf32>
    %c0_40 = arith.constant 0 : index
    %c0_41 = arith.constant 0 : index
    %59 = vector.load %arg15[%c0_40, %c0_41] : memref<8x128xf32, #tpu.memory_space<vmem>>, vector<8x128xf32>
    tpu.vector_store %arg15[%c0_40, %c0_41], %58 {strides = array<i32>} : memref<8x128xf32, #tpu.memory_space<vmem>>, vector<8x128xf32>,
    return
  }
  func.func @transform_0(%arg0: i32) -> (i32, i32) {
    %c0_i32 = arith.constant 0 : i32
    %c0_i32_0 = arith.constant 0 : i32
    return %arg0, %c0_i32 : i32, i32
  }
  func.func @transform_1(%arg0: i32) -> (i32, i32) {
    %c0_i32 = arith.constant 0 : i32
    %c0_i32_0 = arith.constant 0 : i32
    return %arg0, %c0_i32 : i32, i32
  }
  func.func @transform_2(%arg0: i32) -> (i32, i32) {
    %c0_i32 = arith.constant 0 : i32
    %c0_i32_0 = arith.constant 0 : i32
    %c0_i32_1 = arith.constant 0 : i32
    return %c0_i32, %c0_i32_0 : i32, i32
  }
  func.func @transform_3(%arg0: i32) -> (i32, i32) {
    %c0_i32 = arith.constant 0 : i32
    %c0_i32_0 = arith.constant 0 : i32
    %c0_i32_1 = arith.constant 0 : i32
    return %c0_i32, %c0_i32_0 : i32, i32
  }
  func.func @transform_4(%arg0: i32) -> (i32, i32) {
    %c0_i32 = arith.constant 0 : i32
    %c0_i32_0 = arith.constant 0 : i32
    %c0_i32_1 = arith.constant 0 : i32
    return %c0_i32, %c0_i32_0 : i32, i32
  }
  func.func @transform_5(%arg0: i32) -> (i32, i32) {
    %c0_i32 = arith.constant 0 : i32
    %c0_i32_0 = arith.constant 0 : i32
    %c0_i32_1 = arith.constant 0 : i32
    return %c0_i32, %c0_i32_0 : i32, i32
  }
  func.func @transform_6(%arg0: i32) -> (i32, i32) {
    %c0_i32 = arith.constant 0 : i32
    %c0_i32_0 = arith.constant 0 : i32
    %c0_i32_1 = arith.constant 0 : i32
    return %c0_i32, %c0_i32_0 : i32, i32
  }
  func.func @transform_7(%arg0: i32) -> (i32, i32) {
    %c0_i32 = arith.constant 0 : i32
    %c0_i32_0 = arith.constant 0 : i32
    %c0_i32_1 = arith.constant 0 : i32
    return %c0_i32, %c0_i32_0 : i32, i32
  }
  func.func @transform_8(%arg0: i32) -> (i32, i32) {
    %c0_i32 = arith.constant 0 : i32
    %c0_i32_0 = arith.constant 0 : i32
    %c0_i32_1 = arith.constant 0 : i32
    return %c0_i32, %c0_i32_0 : i32, i32
  }
  func.func @transform_9(%arg0: i32) -> (i32, i32) {
    %c0_i32 = arith.constant 0 : i32
    %c0_i32_0 = arith.constant 0 : i32
    %c0_i32_1 = arith.constant 0 : i32
    return %c0_i32, %c0_i32_0 : i32, i32
  }
  func.func @transform_10(%arg0: i32) -> (i32, i32) {
    %c0_i32 = arith.constant 0 : i32
    %c0_i32_0 = arith.constant 0 : i32
    %c0_i32_1 = arith.constant 0 : i32
    return %c0_i32, %c0_i32_0 : i32, i32
  }
  func.func @transform_11(%arg0: i32) -> (i32, i32) {
    %c0_i32 = arith.constant 0 : i32
    %c0_i32_0 = arith.constant 0 : i32
    %c0_i32_1 = arith.constant 0 : i32
    return %c0_i32, %c0_i32_0 : i32, i32
  }
  func.func @transform_12(%arg0: i32) -> (i32, i32) {
    %c0_i32 = arith.constant 0 : i32
    %c0_i32_0 = arith.constant 0 : i32
    %c0_i32_1 = arith.constant 0 : i32
    return %c0_i32, %c0_i32_0 : i32, i32
  }
  func.func @transform_13(%arg0: i32) -> (i32, i32) {
    %c0_i32 = arith.constant 0 : i32
    %c0_i32_0 = arith.constant 0 : i32
    %c0_i32_1 = arith.constant 0 : i32
    return %c0_i32, %c0_i32_0 : i32, i32
  }
  func.func @transform_14(%arg0: i32) -> (i32, i32) {
    %c0_i32 = arith.constant 0 : i32
    %c0_i32_0 = arith.constant 0 : i32
    return %arg0, %c0_i32 : i32, i32
  }
}

</mosaic_0001>

<llo_original>
// kernel: tpu_custom_call.1
$region0: #{tpu_custom_call.1}
  #allocation0 [shape = 'u32[]', space=smem, size = 0x4, offset = 0x4, fixed_abs, tag = 'smem constant byte address 0x4 - core index']
  #allocation1 [shape = 'u32[144,128]{1,0:T(1,128)}', space=vmem, size = 0x12000, scoped, tag = 'internal scratch']
  %s0 = inlined_call_operand.hbm [shape: f32[8,64], index: 0, kind: input, shape index: {}]
  %s1 = inlined_call_operand.hbm [shape: f32[8,16], index: 1, kind: input, shape index: {}]
  %s2 = inlined_call_operand.vmem [shape: f32[64,32], index: 2, kind: input, shape index: {}]
  %s3 = inlined_call_operand.vmem [shape: f32[1,32], index: 3, kind: input, shape index: {}]
  %s4 = inlined_call_operand.vmem [shape: f32[32,32], index: 4, kind: input, shape index: {}]
  %s5 = inlined_call_operand.vmem [shape: f32[1,32], index: 5, kind: input, shape index: {}]
  %s6 = inlined_call_operand.vmem [shape: f32[32,32], index: 6, kind: input, shape index: {}]
  %s7 = inlined_call_operand.vmem [shape: f32[1,32], index: 7, kind: input, shape index: {}]
  %s8 = inlined_call_operand.hbm [shape: f32[16,32], index: 8, kind: input, shape index: {}]
  %s9 = inlined_call_operand.vmem [shape: f32[1,32], index: 9, kind: input, shape index: {}]
  %s10 = inlined_call_operand.vmem [shape: f32[32,32], index: 10, kind: input, shape index: {}]
  %s11 = inlined_call_operand.vmem [shape: f32[1,32], index: 11, kind: input, shape index: {}]
  %s12 = inlined_call_operand.hbm [shape: f32[32,64], index: 12, kind: input, shape index: {}]
  %s13 = inlined_call_operand.vmem [shape: f32[1,64], index: 13, kind: input, shape index: {}]
  %s14 = inlined_call_operand.hbm [shape: f32[8,128], index: 14, kind: output, shape index: {}]
  %s15 = sld [smem:[#allocation0]]
  $region82: #{tpu_custom_call.1} parent=0
    _
  %s17 = ssub.s32 1, %s15
  %s18 = scalar_select 0, %s17, %s15
  $region1: #{tpu_custom_call.1} parent=0
    #allocation2 [shape = 'u8[4096]{0}', space=vmem, size = 0x1000, scoped, tag = 'input window, operand 0, single buffered']
    #allocation3 [shape = 's32[1]{0}', space=sflag, size = 0x4, scoped, tag = 'scoped memory for tpu_custom_call.1']
    #allocation4 [shape = 's32[1]{0}', space=sflag, size = 0x4, scoped, tag = 'scoped memory for tpu_custom_call.1']
    #allocation5 [shape = 'u8[4096]{0}', space=vmem, size = 0x1000, scoped, tag = 'input window, operand 1, single buffered']
    #allocation6 [shape = 's32[1]{0}', space=sflag, size = 0x4, scoped, tag = 'scoped memory for tpu_custom_call.1']
    #allocation7 [shape = 'u8[8192]{0}', space=vmem, size = 0x2000, scoped, tag = 'input window, operand 8, single buffered']
    #allocation8 [shape = 'u8[16384]{0}', space=vmem, size = 0x4000, scoped, tag = 'input window, operand 12, single buffered']
    #allocation9 [shape = 's32[1]{0}', space=sflag, size = 0x4, scoped, tag = 'scoped memory for tpu_custom_call.1']
    #allocation10 [shape = 'u8[4096]{0}', space=vmem, size = 0x1000, scoped, tag = 'output window, operand 0, single buffered']
    %19 = vsyncpa [#allocation3], 0
    %20 = vsyncpa [#allocation6], 0
    %21 = vsyncpa [#allocation9], 0
    %22 = vsyncpa [#allocation4], 0
    // Predicated region
    $region2: #{tpu_custom_call.1} parent=1 // pred_check
      _
    $region3: #{tpu_custom_call.1} parent=1 // pred_check_branch
      %24 = sbr.rel (0) target = $region5
    $region4: #{tpu_custom_call.1} parent=1 // pred_region
      %s26 = ssub.s32 128, 128
      %27 = vsyncadd [#allocation3], %s26
      %s29 = sshll.u32 [#allocation2], 4
      %s30 = int_to_ptr.vmem [resolvable:$true] %s29
      %32 = dma.hbm_to_vmem [thread:$0]  %s0, 128, %s30, [#allocation3]
    $region5: #{tpu_custom_call.1} parent=1 // pred_fallthru
      _
    // Predicated region
    $region6: #{tpu_custom_call.1} parent=1 // pred_check
      _
    $region7: #{tpu_custom_call.1} parent=1 // pred_check_branch
      %34 = sbr.rel (0) target = $region9
    $region8: #{tpu_custom_call.1} parent=1 // pred_region
      %s36 = ssub.s32 128, 128
      %37 = vsyncadd [#allocation6], %s36
      %s39 = sshll.u32 [#allocation5], 4
      %s40 = int_to_ptr.vmem [resolvable:$true] %s39
      %42 = dma.hbm_to_vmem [thread:$0]  %s1, 128, %s40, [#allocation6]
    $region9: #{tpu_custom_call.1} parent=1 // pred_fallthru
      _
    // Predicated region
    $region10: #{tpu_custom_call.1} parent=1 // pred_check
      _
    $region11: #{tpu_custom_call.1} parent=1 // pred_check_branch
      %44 = sbr.rel (0) target = $region13
    $region12: #{tpu_custom_call.1} parent=1 // pred_region
      _
    $region13: #{tpu_custom_call.1} parent=1 // pred_fallthru
      _
    // Predicated region
    $region14: #{tpu_custom_call.1} parent=1 // pred_check
      _
    $region15: #{tpu_custom_call.1} parent=1 // pred_check_branch
      %46 = sbr.rel (0) target = $region17
    $region16: #{tpu_custom_call.1} parent=1 // pred_region
      _
    $region17: #{tpu_custom_call.1} parent=1 // pred_fallthru
      _
    // Predicated region
    $region18: #{tpu_custom_call.1} parent=1 // pred_check
      _
    $region19: #{tpu_custom_call.1} parent=1 // pred_check_branch
      %48 = sbr.rel (0) target = $region21
    $region20: #{tpu_custom_call.1} parent=1 // pred_region
      _
    $region21: #{tpu_custom_call.1} parent=1 // pred_fallthru
      _
    // Predicated region
    $region22: #{tpu_custom_call.1} parent=1 // pred_check
      _
    $region23: #{tpu_custom_call.1} parent=1 // pred_check_branch
      %50 = sbr.rel (0) target = $region25
    $region24: #{tpu_custom_call.1} parent=1 // pred_region
      _
    $region25: #{tpu_custom_call.1} parent=1 // pred_fallthru
      _
    // Predicated region
    $region26: #{tpu_custom_call.1} parent=1 // pred_check
      _
    $region27: #{tpu_custom_call.1} parent=1 // pred_check_branch
      %52 = sbr.rel (0) target = $region29
    $region28: #{tpu_custom_call.1} parent=1 // pred_region
      _
    $region29: #{tpu_custom_call.1} parent=1 // pred_fallthru
      _
    // Predicated region
    $region30: #{tpu_custom_call.1} parent=1 // pred_check
      _
    $region31: #{tpu_custom_call.1} parent=1 // pred_check_branch
      %54 = sbr.rel (0) target = $region33
    $region32: #{tpu_custom_call.1} parent=1 // pred_region
      _
    $region33: #{tpu_custom_call.1} parent=1 // pred_fallthru
      _
    // Predicated region
    $region34: #{tpu_custom_call.1} parent=1 // pred_check
      _
    $region35: #{tpu_custom_call.1} parent=1 // pred_check_branch
      %56 = sbr.rel (0) target = $region37
    $region36: #{tpu_custom_call.1} parent=1 // pred_region
      %s58 = ssub.s32 256, 256
      %59 = vsyncadd [#allocation6], %s58
      %s60 = sshll.u32 [#allocation7], 4
      %s61 = int_to_ptr.vmem [resolvable:$true] %s60
      %66 = dma.hbm_to_vmem [thread:$0]  %s8, 256, %s61, [#allocation6], 128, 128, 8
    $region37: #{tpu_custom_call.1} parent=1 // pred_fallthru
      _
    // Predicated region
    $region38: #{tpu_custom_call.1} parent=1 // pred_check
      _
    $region39: #{tpu_custom_call.1} parent=1 // pred_check_branch
      %68 = sbr.rel (0) target = $region41
    $region40: #{tpu_custom_call.1} parent=1 // pred_region
      _
    $region41: #{tpu_custom_call.1} parent=1 // pred_fallthru
      _
    // Predicated region
    $region42: #{tpu_custom_call.1} parent=1 // pred_check
      _
    $region43: #{tpu_custom_call.1} parent=1 // pred_check_branch
      %70 = sbr.rel (0) target = $region45
    $region44: #{tpu_custom_call.1} parent=1 // pred_region
      _
    $region45: #{tpu_custom_call.1} parent=1 // pred_fallthru
      _
    // Predicated region
    $region46: #{tpu_custom_call.1} parent=1 // pred_check
      _
    $region47: #{tpu_custom_call.1} parent=1 // pred_check_branch
      %72 = sbr.rel (0) target = $region49
    $region48: #{tpu_custom_call.1} parent=1 // pred_region
      _
    $region49: #{tpu_custom_call.1} parent=1 // pred_fallthru
      _
    // Predicated region
    $region50: #{tpu_custom_call.1} parent=1 // pred_check
      _
    $region51: #{tpu_custom_call.1} parent=1 // pred_check_branch
      %74 = sbr.rel (0) target = $region53
    $region52: #{tpu_custom_call.1} parent=1 // pred_region
      %s76 = ssub.s32 512, 512
      %77 = vsyncadd [#allocation9], %s76
      %s78 = sshll.u32 [#allocation8], 4
      %s79 = int_to_ptr.vmem [resolvable:$true] %s78
      %84 = dma.hbm_to_vmem [thread:$0]  %s12, 512, %s79, [#allocation9], 128, 128, 8
    $region53: #{tpu_custom_call.1} parent=1 // pred_fallthru
      _
    // Predicated region
    $region54: #{tpu_custom_call.1} parent=1 // pred_check
      _
    $region55: #{tpu_custom_call.1} parent=1 // pred_check_branch
      %86 = sbr.rel (0) target = $region57
    $region56: #{tpu_custom_call.1} parent=1 // pred_region
      _
    $region57: #{tpu_custom_call.1} parent=1 // pred_fallthru
      _
    // Predicated region
    $region58: #{tpu_custom_call.1} parent=1 // pred_check
      _
    $region59: #{tpu_custom_call.1} parent=1 // pred_check_branch
      %88 = sbr.rel (0) target = $region61
    $region60: #{tpu_custom_call.1} parent=1 // pred_region
      %89 = dma.done [#allocation3], 128
    $region61: #{tpu_custom_call.1} parent=1 // pred_fallthru
      _
    // Predicated region
    $region62: #{tpu_custom_call.1} parent=1 // pred_check
      _
    $region63: #{tpu_custom_call.1} parent=1 // pred_check_branch
      %91 = sbr.rel (0) target = $region65
    $region64: #{tpu_custom_call.1} parent=1 // pred_region
      %92 = dma.done [#allocation6], 128
    $region65: #{tpu_custom_call.1} parent=1 // pred_fallthru
      _
    // Predicated region
    $region66: #{tpu_custom_call.1} parent=1 // pred_check
      _
    $region67: #{tpu_custom_call.1} parent=1 // pred_check_branch
      %94 = sbr.rel (0) target = $region69
    $region68: #{tpu_custom_call.1} parent=1 // pred_region
      %95 = dma.done [#allocation6], 256
    $region69: #{tpu_custom_call.1} parent=1 // pred_fallthru
      _
    // Predicated region
    $region70: #{tpu_custom_call.1} parent=1 // pred_check
      _
    $region71: #{tpu_custom_call.1} parent=1 // pred_check_branch
      %97 = sbr.rel (0) target = $region73
    $region72: #{tpu_custom_call.1} parent=1 // pred_region
      %98 = dma.done [#allocation9], 512
    $region73: #{tpu_custom_call.1} parent=1 // pred_fallthru
      _
    %v99 = vld [vmem:[#allocation2] sm:$0xff]
    %v100 = vld [vmem:[#allocation5] sm:$0xff]
    %v101 = vld [vmem:[%s2] sm:$0xff]
    %v102 = vld [vmem:[%s2 + $0x8] sm:$0xff]
    %v103 = vld [vmem:[%s2 + $0x10] sm:$0xff]
    %v104 = vld [vmem:[%s2 + $0x18] sm:$0xff]
    %v105 = vld [vmem:[%s2 + $0x20] sm:$0xff]
    %v106 = vld [vmem:[%s2 + $0x28] sm:$0xff]
    %v107 = vld [vmem:[%s2 + $0x30] sm:$0xff]
    %v108 = vld [vmem:[%s2 + $0x38] sm:$0xff]
    %v109 = vld [vmem:[%s3] sm:$0x1]
    %v111 = vlaneseq
    %v112 = vshrl.u32 %v111, 7
    %v113 = vsub.s32 0, %v112
    %v114 = vrot.slane %v109, %v113
    %vm116 = vcmask 523264
    %v118 = vsel %vm116, %v99, 0
    %120 = vmatprep.subr.mxu0 0.0
    %121 = vmatpush1.msra.mxu0 0.0
    %122 = vmatprep.subr.mxu0 0.0
    %123 = vmatpush1.msra.mxu0 0.0
    %124 = vmatprep.subr.mxu0 0.0
    %125 = vmatpush1.msra.mxu0 0.0
    %126 = vmatprep.subr.mxu0 0.0
    %127 = vmatpush1.msra.mxu0 0.0
    %128 = vmatprep.subr.mxu0 0.0
    %129 = vmatpush1.msra.mxu0 0.0
    %130 = vmatprep.subr.mxu0 0.0
    %131 = vmatpush1.msra.mxu0 0.0
    %132 = vmatprep.subr.mxu0 0.0
    %133 = vmatpush1.msra.mxu0 0.0
    %134 = vmatprep.subr.mxu0 0.0
    %135 = vmatpush1.msra.mxu0 0.0
    %136 = vmatprep.subr.mxu0 0.0
    %137 = vmatpush1.msra.mxu0 %v108
    %138 = vmatprep.subr.mxu0 0.0
    %139 = vmatpush1.msra.mxu0 %v107
    %140 = vmatprep.subr.mxu0 0.0
    %141 = vmatpush1.msra.mxu0 %v106
    %142 = vmatprep.subr.mxu0 0.0
    %143 = vmatpush1.msra.mxu0 %v105
    %144 = vmatprep.subr.mxu0 0.0
    %145 = vmatpush1.msra.mxu0 %v104
    %146 = vmatprep.subr.mxu0 0.0
    %147 = vmatpush1.msra.mxu0 %v103
    %148 = vmatprep.subr.mxu0 0.0
    %149 = vmatpush1.msra.mxu0 %v102
    %150 = vmatprep.subr.mxu0 0.0
    %151 = vmatpush1.msra.mxu0 %v101
    %152 = vmatprep.subr.mxu0 0.0
    %153 = vmatpush2.msra.mxu0 0.0
    %154 = vmatprep.subr.mxu0 0.0
    %155 = vmatpush2.msra.mxu0 0.0
    %156 = vmatprep.subr.mxu0 0.0
    %157 = vmatpush2.msra.mxu0 0.0
    %158 = vmatprep.subr.mxu0 0.0
    %159 = vmatpush2.msra.mxu0 0.0
    %160 = vmatprep.subr.mxu0 0.0
    %161 = vmatpush2.msra.mxu0 0.0
    %162 = vmatprep.subr.mxu0 0.0
    %163 = vmatpush2.msra.mxu0 0.0
    %164 = vmatprep.subr.mxu0 0.0
    %165 = vmatpush2.msra.mxu0 0.0
    %166 = vmatprep.subr.mxu0 0.0
    %167 = vmatpush2.msra.mxu0 0.0
    %168 = vmatprep.subr.mxu0 0.0
    %169 = vmatpush2.msra.mxu0 0.0
    %170 = vmatprep.subr.mxu0 0.0
    %171 = vmatpush2.msra.mxu0 0.0
    %172 = vmatprep.subr.mxu0 0.0
    %173 = vmatpush2.msra.mxu0 0.0
    %174 = vmatprep.subr.mxu0 0.0
    %175 = vmatpush2.msra.mxu0 0.0
    %176 = vmatprep.subr.mxu0 0.0
    %177 = vmatpush2.msra.mxu0 0.0
    %178 = vmatprep.subr.mxu0 0.0
    %179 = vmatpush2.msra.mxu0 0.0
    %180 = vmatprep.subr.mxu0 0.0
    %181 = vmatpush2.msra.mxu0 0.0
    %182 = vmatprep.subr.mxu0 0.0
    %183 = vmatpush2.msra.mxu0 0.0
    %184 = vmatprep.mubr.f32.mxu0 0.0
    %185 = vmatmul.mubr.f32.gmra.mxu0 %v118
    %v186 = vpop.f32.mrf.mxu0
    %v187 = vadd.f32 %v114, %v186
    %v188 = vpop.f32.mrf.mxu0
    %189 = vdwg.mxu0
    %v190 = vmul.f32 %v187, 0.2
    %v191 = vmax.f32 %v187, %v190
    %v192 = vld [vmem:[%s4] sm:$0xff]
    %v193 = vld [vmem:[%s4 + $0x8] sm:$0xff]
    %v194 = vld [vmem:[%s4 + $0x10] sm:$0xff]
    %v195 = vld [vmem:[%s4 + $0x18] sm:$0xff]
    %v196 = vld [vmem:[%s5] sm:$0x1]
    %v198 = vlaneseq
    %v199 = vshrl.u32 %v198, 7
    %v200 = vsub.s32 0, %v199
    %v201 = vrot.slane %v196, %v200
    %vm203 = vcmask 261120
    %v205 = vsel %vm203, %v191, 0
    %207 = vmatprep.subr.mxu0 0.0
    %208 = vmatpush1.msra.mxu0 0.0
    %209 = vmatprep.subr.mxu0 0.0
    %210 = vmatpush1.msra.mxu0 0.0
    %211 = vmatprep.subr.mxu0 0.0
    %212 = vmatpush1.msra.mxu0 0.0
    %213 = vmatprep.subr.mxu0 0.0
    %214 = vmatpush1.msra.mxu0 0.0
    %215 = vmatprep.subr.mxu0 0.0
    %216 = vmatpush1.msra.mxu0 0.0
    %217 = vmatprep.subr.mxu0 0.0
    %218 = vmatpush1.msra.mxu0 0.0
    %219 = vmatprep.subr.mxu0 0.0
    %220 = vmatpush1.msra.mxu0 0.0
    %221 = vmatprep.subr.mxu0 0.0
    %222 = vmatpush1.msra.mxu0 0.0
    %223 = vmatprep.subr.mxu0 0.0
    %224 = vmatpush1.msra.mxu0 0.0
    %225 = vmatprep.subr.mxu0 0.0
    %226 = vmatpush1.msra.mxu0 0.0
    %227 = vmatprep.subr.mxu0 0.0
    %228 = vmatpush1.msra.mxu0 0.0
    %229 = vmatprep.subr.mxu0 0.0
    %230 = vmatpush1.msra.mxu0 0.0
    %231 = vmatprep.subr.mxu0 0.0
    %232 = vmatpush1.msra.mxu0 %v195
    %233 = vmatprep.subr.mxu0 0.0
    %234 = vmatpush1.msra.mxu0 %v194
    %235 = vmatprep.subr.mxu0 0.0
    %236 = vmatpush1.msra.mxu0 %v193
    %237 = vmatprep.subr.mxu0 0.0
    %238 = vmatpush1.msra.mxu0 %v192
    %239 = vmatprep.subr.mxu0 0.0
    %240 = vmatpush2.msra.mxu0 0.0
    %241 = vmatprep.subr.mxu0 0.0
    %242 = vmatpush2.msra.mxu0 0.0
    %243 = vmatprep.subr.mxu0 0.0
    %244 = vmatpush2.msra.mxu0 0.0
    %245 = vmatprep.subr.mxu0 0.0
    %246 = vmatpush2.msra.mxu0 0.0
    %247 = vmatprep.subr.mxu0 0.0
    %248 = vmatpush2.msra.mxu0 0.0
    %249 = vmatprep.subr.mxu0 0.0
    %250 = vmatpush2.msra.mxu0 0.0
    %251 = vmatprep.subr.mxu0 0.0
    %252 = vmatpush2.msra.mxu0 0.0
    %253 = vmatprep.subr.mxu0 0.0
    %254 = vmatpush2.msra.mxu0 0.0
    %255 = vmatprep.subr.mxu0 0.0
    %256 = vmatpush2.msra.mxu0 0.0
    %257 = vmatprep.subr.mxu0 0.0
    %258 = vmatpush2.msra.mxu0 0.0
    %259 = vmatprep.subr.mxu0 0.0
    %260 = vmatpush2.msra.mxu0 0.0
    %261 = vmatprep.subr.mxu0 0.0
    %262 = vmatpush2.msra.mxu0 0.0
    %263 = vmatprep.subr.mxu0 0.0
    %264 = vmatpush2.msra.mxu0 0.0
    %265 = vmatprep.subr.mxu0 0.0
    %266 = vmatpush2.msra.mxu0 0.0
    %267 = vmatprep.subr.mxu0 0.0
    %268 = vmatpush2.msra.mxu0 0.0
    %269 = vmatprep.subr.mxu0 0.0
    %270 = vmatpush2.msra.mxu0 0.0
    %271 = vmatprep.mubr.f32.mxu0 0.0
    %272 = vmatmul.mubr.f32.gmra.mxu0 %v205
    %v273 = vpop.f32.mrf.mxu0
    %v274 = vadd.f32 %v201, %v273
    %v275 = vpop.f32.mrf.mxu0
    %276 = vdwg.mxu0
    %v277 = vmul.f32 %v274, 0.2
    %v278 = vmax.f32 %v274, %v277
    %v279 = vld [vmem:[%s6] sm:$0xff]
    %v280 = vld [vmem:[%s6 + $0x8] sm:$0xff]
    %v281 = vld [vmem:[%s6 + $0x10] sm:$0xff]
    %v282 = vld [vmem:[%s6 + $0x18] sm:$0xff]
    %v283 = vld [vmem:[%s7] sm:$0x1]
    %v285 = vlaneseq
    %v286 = vshrl.u32 %v285, 7
    %v287 = vsub.s32 0, %v286
    %v288 = vrot.slane %v283, %v287
    %v291 = vsel %vm203, %v278, 0
    %293 = vmatprep.subr.mxu0 0.0
    %294 = vmatpush1.msra.mxu0 0.0
    %295 = vmatprep.subr.mxu0 0.0
    %296 = vmatpush1.msra.mxu0 0.0
    %297 = vmatprep.subr.mxu0 0.0
    %298 = vmatpush1.msra.mxu0 0.0
    %299 = vmatprep.subr.mxu0 0.0
    %300 = vmatpush1.msra.mxu0 0.0
    %301 = vmatprep.subr.mxu0 0.0
    %302 = vmatpush1.msra.mxu0 0.0
    %303 = vmatprep.subr.mxu0 0.0
    %304 = vmatpush1.msra.mxu0 0.0
    %305 = vmatprep.subr.mxu0 0.0
    %306 = vmatpush1.msra.mxu0 0.0
    %307 = vmatprep.subr.mxu0 0.0
    %308 = vmatpush1.msra.mxu0 0.0
    %309 = vmatprep.subr.mxu0 0.0
    %310 = vmatpush1.msra.mxu0 0.0
    %311 = vmatprep.subr.mxu0 0.0
    %312 = vmatpush1.msra.mxu0 0.0
    %313 = vmatprep.subr.mxu0 0.0
    %314 = vmatpush1.msra.mxu0 0.0
    %315 = vmatprep.subr.mxu0 0.0
    %316 = vmatpush1.msra.mxu0 0.0
    %317 = vmatprep.subr.mxu0 0.0
    %318 = vmatpush1.msra.mxu0 %v282
    %319 = vmatprep.subr.mxu0 0.0
    %320 = vmatpush1.msra.mxu0 %v281
    %321 = vmatprep.subr.mxu0 0.0
    %322 = vmatpush1.msra.mxu0 %v280
    %323 = vmatprep.subr.mxu0 0.0
    %324 = vmatpush1.msra.mxu0 %v279
    %325 = vmatprep.subr.mxu0 0.0
    %326 = vmatpush2.msra.mxu0 0.0
    %327 = vmatprep.subr.mxu0 0.0
    %328 = vmatpush2.msra.mxu0 0.0
    %329 = vmatprep.subr.mxu0 0.0
    %330 = vmatpush2.msra.mxu0 0.0
    %331 = vmatprep.subr.mxu0 0.0
    %332 = vmatpush2.msra.mxu0 0.0
    %333 = vmatprep.subr.mxu0 0.0
    %334 = vmatpush2.msra.mxu0 0.0
    %335 = vmatprep.subr.mxu0 0.0
    %336 = vmatpush2.msra.mxu0 0.0
    %337 = vmatprep.subr.mxu0 0.0
    %338 = vmatpush2.msra.mxu0 0.0
    %339 = vmatprep.subr.mxu0 0.0
    %340 = vmatpush2.msra.mxu0 0.0
    %341 = vmatprep.subr.mxu0 0.0
    %342 = vmatpush2.msra.mxu0 0.0
    %343 = vmatprep.subr.mxu0 0.0
    %344 = vmatpush2.msra.mxu0 0.0
    %345 = vmatprep.subr.mxu0 0.0
    %346 = vmatpush2.msra.mxu0 0.0
    %347 = vmatprep.subr.mxu0 0.0
    %348 = vmatpush2.msra.mxu0 0.0
    %349 = vmatprep.subr.mxu0 0.0
    %350 = vmatpush2.msra.mxu0 0.0
    %351 = vmatprep.subr.mxu0 0.0
    %352 = vmatpush2.msra.mxu0 0.0
    %353 = vmatprep.subr.mxu0 0.0
    %354 = vmatpush2.msra.mxu0 0.0
    %355 = vmatprep.subr.mxu0 0.0
    %356 = vmatpush2.msra.mxu0 0.0
    %357 = vmatprep.mubr.f32.mxu0 0.0
    %358 = vmatmul.mubr.f32.gmra.mxu0 %v291
    %v359 = vpop.f32.mrf.mxu0
    %v360 = vadd.f32 %v288, %v359
    %v361 = vpop.f32.mrf.mxu0
    %362 = vdwg.mxu0
    %v363 = vmul.f32 %v360, 0.5
    %v364 = vmul.f32 %v363, 1.442695
    %v365 = vpow.pop %v364
    %367 = vrot.lane.b32.xlu0 %v100, 16
    %v368 = vpop.permute.xlu0 %367
    %v370 = vmul.f32 %v365, %v368
    %372 = vrot.lane.b32.xlu0 %v370, 112
    %v373 = vpop.permute.xlu0 %372
    %v375 = vadd.f32 %v360, %v373
    %v376 = vld [vmem:[#allocation7] sm:$0xff]
    %v377 = vld [vmem:[#allocation7 + $0x8] sm:$0xff]
    %v378 = vld [vmem:[%s9] sm:$0x1]
    %v380 = vlaneseq
    %v381 = vshrl.u32 %v380, 7
    %v382 = vsub.s32 0, %v381
    %v383 = vrot.slane %v378, %v382
    %vm385 = vcmask 130048
    %v387 = vsel %vm385, %v375, 0
    %389 = vmatprep.subr.mxu0 0.0
    %390 = vmatpush1.msra.mxu0 0.0
    %391 = vmatprep.subr.mxu0 0.0
    %392 = vmatpush1.msra.mxu0 0.0
    %393 = vmatprep.subr.mxu0 0.0
    %394 = vmatpush1.msra.mxu0 0.0
    %395 = vmatprep.subr.mxu0 0.0
    %396 = vmatpush1.msra.mxu0 0.0
    %397 = vmatprep.subr.mxu0 0.0
    %398 = vmatpush1.msra.mxu0 0.0
    %399 = vmatprep.subr.mxu0 0.0
    %400 = vmatpush1.msra.mxu0 0.0
    %401 = vmatprep.subr.mxu0 0.0
    %402 = vmatpush1.msra.mxu0 0.0
    %403 = vmatprep.subr.mxu0 0.0
    %404 = vmatpush1.msra.mxu0 0.0
    %405 = vmatprep.subr.mxu0 0.0
    %406 = vmatpush1.msra.mxu0 0.0
    %407 = vmatprep.subr.mxu0 0.0
    %408 = vmatpush1.msra.mxu0 0.0
    %409 = vmatprep.subr.mxu0 0.0
    %410 = vmatpush1.msra.mxu0 0.0
    %411 = vmatprep.subr.mxu0 0.0
    %412 = vmatpush1.msra.mxu0 0.0
    %413 = vmatprep.subr.mxu0 0.0
    %414 = vmatpush1.msra.mxu0 0.0
    %415 = vmatprep.subr.mxu0 0.0
    %416 = vmatpush1.msra.mxu0 0.0
    %417 = vmatprep.subr.mxu0 0.0
    %418 = vmatpush1.msra.mxu0 %v377
    %419 = vmatprep.subr.mxu0 0.0
    %420 = vmatpush1.msra.mxu0 %v376
    %421 = vmatprep.subr.mxu0 0.0
    %422 = vmatpush2.msra.mxu0 0.0
    %423 = vmatprep.subr.mxu0 0.0
    %424 = vmatpush2.msra.mxu0 0.0
    %425 = vmatprep.subr.mxu0 0.0
    %426 = vmatpush2.msra.mxu0 0.0
    %427 = vmatprep.subr.mxu0 0.0
    %428 = vmatpush2.msra.mxu0 0.0
    %429 = vmatprep.subr.mxu0 0.0
    %430 = vmatpush2.msra.mxu0 0.0
    %431 = vmatprep.subr.mxu0 0.0
    %432 = vmatpush2.msra.mxu0 0.0
    %433 = vmatprep.subr.mxu0 0.0
    %434 = vmatpush2.msra.mxu0 0.0
    %435 = vmatprep.subr.mxu0 0.0
    %436 = vmatpush2.msra.mxu0 0.0
    %437 = vmatprep.subr.mxu0 0.0
    %438 = vmatpush2.msra.mxu0 0.0
    %439 = vmatprep.subr.mxu0 0.0
    %440 = vmatpush2.msra.mxu0 0.0
    %441 = vmatprep.subr.mxu0 0.0
    %442 = vmatpush2.msra.mxu0 0.0
    %443 = vmatprep.subr.mxu0 0.0
    %444 = vmatpush2.msra.mxu0 0.0
    %445 = vmatprep.subr.mxu0 0.0
    %446 = vmatpush2.msra.mxu0 0.0
    %447 = vmatprep.subr.mxu0 0.0
    %448 = vmatpush2.msra.mxu0 0.0
    %449 = vmatprep.subr.mxu0 0.0
    %450 = vmatpush2.msra.mxu0 0.0
    %451 = vmatprep.subr.mxu0 0.0
    %452 = vmatpush2.msra.mxu0 0.0
    %453 = vmatprep.mubr.f32.mxu0 0.0
    %454 = vmatmul.mubr.f32.gmra.mxu0 %v387
    %v455 = vpop.f32.mrf.mxu0
    %v456 = vadd.f32 %v383, %v455
    %v457 = vpop.f32.mrf.mxu0
    %458 = vdwg.mxu0
    %v459 = vmul.f32 %v456, 0.2
    %v460 = vmax.f32 %v456, %v459
    %v461 = vld [vmem:[%s10] sm:$0xff]
    %v462 = vld [vmem:[%s10 + $0x8] sm:$0xff]
    %v463 = vld [vmem:[%s10 + $0x10] sm:$0xff]
    %v464 = vld [vmem:[%s10 + $0x18] sm:$0xff]
    %v465 = vld [vmem:[%s11] sm:$0x1]
    %v467 = vlaneseq
    %v468 = vshrl.u32 %v467, 7
    %v469 = vsub.s32 0, %v468
    %v470 = vrot.slane %v465, %v469
    %v473 = vsel %vm203, %v460, 0
    %475 = vmatprep.subr.mxu0 0.0
    %476 = vmatpush1.msra.mxu0 0.0
    %477 = vmatprep.subr.mxu0 0.0
    %478 = vmatpush1.msra.mxu0 0.0
    %479 = vmatprep.subr.mxu0 0.0
    %480 = vmatpush1.msra.mxu0 0.0
    %481 = vmatprep.subr.mxu0 0.0
    %482 = vmatpush1.msra.mxu0 0.0
    %483 = vmatprep.subr.mxu0 0.0
    %484 = vmatpush1.msra.mxu0 0.0
    %485 = vmatprep.subr.mxu0 0.0
    %486 = vmatpush1.msra.mxu0 0.0
    %487 = vmatprep.subr.mxu0 0.0
    %488 = vmatpush1.msra.mxu0 0.0
    %489 = vmatprep.subr.mxu0 0.0
    %490 = vmatpush1.msra.mxu0 0.0
    %491 = vmatprep.subr.mxu0 0.0
    %492 = vmatpush1.msra.mxu0 0.0
    %493 = vmatprep.subr.mxu0 0.0
    %494 = vmatpush1.msra.mxu0 0.0
    %495 = vmatprep.subr.mxu0 0.0
    %496 = vmatpush1.msra.mxu0 0.0
    %497 = vmatprep.subr.mxu0 0.0
    %498 = vmatpush1.msra.mxu0 0.0
    %499 = vmatprep.subr.mxu0 0.0
    %500 = vmatpush1.msra.mxu0 %v464
    %501 = vmatprep.subr.mxu0 0.0
    %502 = vmatpush1.msra.mxu0 %v463
    %503 = vmatprep.subr.mxu0 0.0
    %504 = vmatpush1.msra.mxu0 %v462
    %505 = vmatprep.subr.mxu0 0.0
    %506 = vmatpush1.msra.mxu0 %v461
    %507 = vmatprep.subr.mxu0 0.0
    %508 = vmatpush2.msra.mxu0 0.0
    %509 = vmatprep.subr.mxu0 0.0
    %510 = vmatpush2.msra.mxu0 0.0
    %511 = vmatprep.subr.mxu0 0.0
    %512 = vmatpush2.msra.mxu0 0.0
    %513 = vmatprep.subr.mxu0 0.0
    %514 = vmatpush2.msra.mxu0 0.0
    %515 = vmatprep.subr.mxu0 0.0
    %516 = vmatpush2.msra.mxu0 0.0
    %517 = vmatprep.subr.mxu0 0.0
    %518 = vmatpush2.msra.mxu0 0.0
    %519 = vmatprep.subr.mxu0 0.0
    %520 = vmatpush2.msra.mxu0 0.0
    %521 = vmatprep.subr.mxu0 0.0
    %522 = vmatpush2.msra.mxu0 0.0
    %523 = vmatprep.subr.mxu0 0.0
    %524 = vmatpush2.msra.mxu0 0.0
    %525 = vmatprep.subr.mxu0 0.0
    %526 = vmatpush2.msra.mxu0 0.0
    %527 = vmatprep.subr.mxu0 0.0
    %528 = vmatpush2.msra.mxu0 0.0
    %529 = vmatprep.subr.mxu0 0.0
    %530 = vmatpush2.msra.mxu0 0.0
    %531 = vmatprep.subr.mxu0 0.0
    %532 = vmatpush2.msra.mxu0 0.0
    %533 = vmatprep.subr.mxu0 0.0
    %534 = vmatpush2.msra.mxu0 0.0
    %535 = vmatprep.subr.mxu0 0.0
    %536 = vmatpush2.msra.mxu0 0.0
    %537 = vmatprep.subr.mxu0 0.0
    %538 = vmatpush2.msra.mxu0 0.0
    %539 = vmatprep.mubr.f32.mxu0 0.0
    %540 = vmatmul.mubr.f32.gmra.mxu0 %v473
    %v541 = vpop.f32.mrf.mxu0
    %v542 = vadd.f32 %v470, %v541
    %v543 = vpop.f32.mrf.mxu0
    %544 = vdwg.mxu0
    %v545 = vmul.f32 %v542, 0.2
    %v546 = vmax.f32 %v542, %v545
    %v547 = vld [vmem:[#allocation8] sm:$0xff]
    %v548 = vld [vmem:[#allocation8 + $0x8] sm:$0xff]
    %v549 = vld [vmem:[#allocation8 + $0x10] sm:$0xff]
    %v550 = vld [vmem:[#allocation8 + $0x18] sm:$0xff]
    %v551 = vld [vmem:[%s13] sm:$0x1]
    %v553 = vlaneseq
    %v554 = vshrl.u32 %v553, 7
    %v555 = vsub.s32 0, %v554
    %v556 = vrot.slane %v551, %v555
    %v559 = vsel %vm203, %v546, 0
    %561 = vmatprep.subr.mxu0 0.0
    %562 = vmatpush1.msra.mxu0 0.0
    %563 = vmatprep.subr.mxu0 0.0
    %564 = vmatpush1.msra.mxu0 0.0
    %565 = vmatprep.subr.mxu0 0.0
    %566 = vmatpush1.msra.mxu0 0.0
    %567 = vmatprep.subr.mxu0 0.0
    %568 = vmatpush1.msra.mxu0 0.0
    %569 = vmatprep.subr.mxu0 0.0
    %570 = vmatpush1.msra.mxu0 0.0
    %571 = vmatprep.subr.mxu0 0.0
    %572 = vmatpush1.msra.mxu0 0.0
    %573 = vmatprep.subr.mxu0 0.0
    %574 = vmatpush1.msra.mxu0 0.0
    %575 = vmatprep.subr.mxu0 0.0
    %576 = vmatpush1.msra.mxu0 0.0
    %577 = vmatprep.subr.mxu0 0.0
    %578 = vmatpush1.msra.mxu0 0.0
    %579 = vmatprep.subr.mxu0 0.0
    %580 = vmatpush1.msra.mxu0 0.0
    %581 = vmatprep.subr.mxu0 0.0
    %582 = vmatpush1.msra.mxu0 0.0
    %583 = vmatprep.subr.mxu0 0.0
    %584 = vmatpush1.msra.mxu0 0.0
    %585 = vmatprep.subr.mxu0 0.0
    %586 = vmatpush1.msra.mxu0 %v550
    %587 = vmatprep.subr.mxu0 0.0
    %588 = vmatpush1.msra.mxu0 %v549
    %589 = vmatprep.subr.mxu0 0.0
    %590 = vmatpush1.msra.mxu0 %v548
    %591 = vmatprep.subr.mxu0 0.0
    %592 = vmatpush1.msra.mxu0 %v547
    %593 = vmatprep.subr.mxu0 0.0
    %594 = vmatpush2.msra.mxu0 0.0
    %595 = vmatprep.subr.mxu0 0.0
    %596 = vmatpush2.msra.mxu0 0.0
    %597 = vmatprep.subr.mxu0 0.0
    %598 = vmatpush2.msra.mxu0 0.0
    %599 = vmatprep.subr.mxu0 0.0
    %600 = vmatpush2.msra.mxu0 0.0
    %601 = vmatprep.subr.mxu0 0.0
    %602 = vmatpush2.msra.mxu0 0.0
    %603 = vmatprep.subr.mxu0 0.0
    %604 = vmatpush2.msra.mxu0 0.0
    %605 = vmatprep.subr.mxu0 0.0
    %606 = vmatpush2.msra.mxu0 0.0
    %607 = vmatprep.subr.mxu0 0.0
    %608 = vmatpush2.msra.mxu0 0.0
    %609 = vmatprep.subr.mxu0 0.0
    %610 = vmatpush2.msra.mxu0 0.0
    %611 = vmatprep.subr.mxu0 0.0
    %612 = vmatpush2.msra.mxu0 0.0
    %613 = vmatprep.subr.mxu0 0.0
    %614 = vmatpush2.msra.mxu0 0.0
    %615 = vmatprep.subr.mxu0 0.0
    %616 = vmatpush2.msra.mxu0 0.0
    %617 = vmatprep.subr.mxu0 0.0
    %618 = vmatpush2.msra.mxu0 0.0
    %619 = vmatprep.subr.mxu0 0.0
    %620 = vmatpush2.msra.mxu0 0.0
    %621 = vmatprep.subr.mxu0 0.0
    %622 = vmatpush2.msra.mxu0 0.0
    %623 = vmatprep.subr.mxu0 0.0
    %624 = vmatpush2.msra.mxu0 0.0
    %625 = vmatprep.mubr.f32.mxu0 0.0
    %626 = vmatmul.mubr.f32.gmra.mxu0 %v559
    %v627 = vpop.f32.mrf.mxu0
    %v628 = vadd.f32 %v556, %v627
    %v629 = vpop.f32.mrf.mxu0
    %630 = vdwg.mxu0
    %v631 = vsub.f32 0.0, %v628
    %v632 = vmul.f32 %v631, 1.442695
    %v633 = vpow.pop %v632
    %v634 = vadd.f32 %v633, 1.0
    %v635 = vrcp.pop %v634
    %637 = vrot.lane.b32.xlu0 %v360, 64
    %v638 = vpop.permute.xlu0 %637
    %v640 = vsel %vm116, %v635, %v638
    %vm641 = vcmask 785408
    %v642 = vsel %vm641, %v640, 0.0
    %643 = vst [vmem:[#allocation10] sm:$0xff] %v642
    // Predicated region
    $region74: #{tpu_custom_call.1} parent=1 // pred_check
      _
    $region75: #{tpu_custom_call.1} parent=1 // pred_check_branch
      %645 = sbr.rel (0) target = $region77
    $region76: #{tpu_custom_call.1} parent=1 // pred_region
      %s647 = ssub.s32 128, 128
      %648 = vsyncadd [#allocation4], %s647
      %s650 = sshll.u32 [#allocation10], 4
      %s651 = int_to_ptr.vmem [resolvable:$true] %s650
      %653 = dma.vmem_to_hbm [thread:$0]  %s651, 128, %s14, [#allocation4]
    $region77: #{tpu_custom_call.1} parent=1 // pred_fallthru
      _
    // Predicated region
    $region78: #{tpu_custom_call.1} parent=1 // pred_check
      _
    $region79: #{tpu_custom_call.1} parent=1 // pred_check_branch
      %655 = sbr.rel (0) target = $region81
    $region80: #{tpu_custom_call.1} parent=1 // pred_region
      %656 = dma.done [#allocation4], 128
    $region81: #{tpu_custom_call.1} parent=1 // pred_fallthru
      _
    %657 = vsyncpa [#allocation3], 1
    %658 = vsyncpa [#allocation6], 1
    %659 = vsyncpa [#allocation9], 1
    %660 = vsyncpa [#allocation4], 1

</llo_original>
